<compile_context>
chip_gen: v5e
topology: v5e:2x2
jax: 0.10.0
libtpu: 0.0.40
codegen_flags: <defaults>
</compile_context>

<pallas_src>
import functools

import jax
import jax.numpy as jnp
from jax.experimental import pallas as pl
from jax.experimental.pallas import tpu as pltpu


def _round_up(x: int, m: int) -> int:
    return (x + m - 1) // m * m


# ----------------------------------------------------------------------------
# Pallas kernel: fused (patches @ W) * bn_scale + bn_bias (+residual) (+ReLU)
# ----------------------------------------------------------------------------
def _conv_mm_kernel(x_ref, w_ref, s_ref, b_ref, *rest,
                    apply_relu: bool, has_residual: bool):
    # x_ref: (tile_m, K_pad) im2col patches   w_ref: (K_pad, N_pad) conv weight
    # s_ref, b_ref: (1, N_pad) folded BatchNorm scale / bias (f32)
    # rest = ([res_ref (tile_m, N_pad)], out_ref (tile_m, N_pad))
    if has_residual:
        res_ref, o_ref = rest
    else:
        (o_ref,) = rest

    # Native-dtype operands into the MXU; f32 accumulation.
    acc = jnp.dot(x_ref[...], w_ref[...], preferred_element_type=jnp.float32)
    y = acc * s_ref[...] + b_ref[...]
    if has_residual:
        y = y + res_ref[...].astype(jnp.float32)
    if apply_relu:
        y = jnp.maximum(y, 0.0)
    o_ref[...] = y.astype(o_ref.dtype)


def _matmul_bn_act(patches, w2d, scale, bias, *, apply_relu,
                   residual=None, out_dtype, tile_m=None):
    """out[:M,:N] = act(patches @ w2d * scale + bias (+ residual))."""
    M, K = patches.shape
    N = w2d.shape[1]
    K_pad = _round_up(K, 128)          # lane-dense patch loads
    N_pad = _round_up(N, 128)          # lane-dense (unmasked) output stores

    if tile_m is None:
        # ~256-row tiles for big problems; for small M shrink so the grid
        # still has ~8 steps and the pipeline actually overlaps DMA/compute.
        tile_m = min(256, _round_up(max(M // 8, 8), 8))
    tile_m = _round_up(tile_m, 8)
    M_pad = _round_up(M, tile_m)       # no divisibility assert: pad + slice
    grid_m = M_pad // tile_m

    x_p = jnp.pad(patches, ((0, M_pad - M), (0, K_pad - K)))
    w_p = jnp.pad(w2d, ((0, K_pad - K), (0, N_pad - N)))
    s_p = jnp.pad(scale.astype(jnp.float32), (0, N_pad - N)).reshape(1, N_pad)
    b_p = jnp.pad(bias.astype(jnp.float32), (0, N_pad - N)).reshape(1, N_pad)

    in_specs = [
        pl.BlockSpec((tile_m, K_pad), lambda i: (i, 0)),
        # TODO(synk): single-buffer the grid-resident weight/scale/bias blocks
        # (pipeline_mode=pl.Buffered(1)) once verified on the target jax rev.
        pl.BlockSpec((K_pad, N_pad), lambda i: (0, 0)),
        pl.BlockSpec((1, N_pad), lambda i: (0, 0)),
        pl.BlockSpec((1, N_pad), lambda i: (0, 0)),
    ]
    inputs = [x_p, w_p, s_p, b_p]
    if residual is not None:
        r_p = jnp.pad(residual.astype(out_dtype), ((0, M_pad - M), (0, N_pad - N)))
        in_specs.append(pl.BlockSpec((tile_m, N_pad), lambda i: (i, 0)))
        inputs.append(r_p)

    # Explicit scoped-VMEM budget (double-buffered tiles + resident weight),
    # with headroom but kept well under v7x's 64 MiB physical VMEM.
    itemsize = jnp.dtype(patches.dtype).itemsize
    est = 2 * tile_m * K_pad * itemsize                      # input tiles
    est += 2 * K_pad * N_pad * itemsize                      # weight buffers
    est += 2 * tile_m * N_pad * jnp.dtype(out_dtype).itemsize  # output tiles
    if residual is not None:
        est += 2 * tile_m * N_pad * jnp.dtype(out_dtype).itemsize
    est += 4 * N_pad * 4 + (1 << 20)                         # scale/bias + slack
    vmem_limit = int(min(max(2 * est, 16 << 20), 56 << 20))

    kernel = functools.partial(_conv_mm_kernel, apply_relu=apply_relu,
                               has_residual=residual is not None)

    out = pl.pallas_call(
        kernel,
        out_shape=jax.ShapeDtypeStruct((M_pad, N_pad), out_dtype),
        grid_spec=pltpu.PrefetchScalarGridSpec(
            num_scalar_prefetch=0,
            grid=(grid_m,),
            in_specs=in_specs,
            out_specs=pl.BlockSpec((tile_m, N_pad), lambda i: (i, 0)),
        ),
        compiler_params=pltpu.CompilerParams(
            dimension_semantics=("parallel",),   # shard M-grid across TCs (v7x)
            vmem_limit_bytes=vmem_limit,
        ),
    )(*inputs)

    return out[:M, :N]


# ----------------------------------------------------------------------------
# Wrapper glue (plain JAX): im2col, ceil-mode avg-pool, BN folding
# ----------------------------------------------------------------------------
def _im2col(x_nhwc, kh, kw, stride, padding):
    # TODO(synk): patch extraction stays in wrapper glue; an in-kernel version
    # would need manual strided DMA gathers and is not worth it vs the matmul.
    B, H, W, C = x_nhwc.shape
    sh, sw = stride
    ph, pw = padding
    x_pad = jnp.pad(x_nhwc, ((0, 0), (ph, ph), (pw, pw), (0, 0)))
    H_out = (H + 2 * ph - kh) // sh + 1
    W_out = (W + 2 * pw - kw) // sw + 1
    cols = []
    for dy in range(kh):
        for dx in range(kw):
            patch = jax.lax.slice(
                x_pad,
                (0, dy, dx, 0),
                (B, dy + (H_out - 1) * sh + 1, dx + (W_out - 1) * sw + 1, C),
                (1, sh, sw, 1),
            )
            cols.append(patch)                        # (B, H_out, W_out, C)
    patches = jnp.concatenate(cols, axis=-1)          # feature order (dy, dx, c)
    return patches.reshape(B * H_out * W_out, kh * kw * C), (B, H_out, W_out)


def _avg_pool_ceil(x_nhwc, ksize):
    # nn.AvgPool2d(kernel_size=k, stride=k, padding=0, ceil_mode=True)
    kh, kw = ksize
    if kh == 1 and kw == 1:
        return x_nhwc
    B, H, W, C = x_nhwc.shape
    H_out = -(-H // kh)
    W_out = -(-W // kw)
    x_pad = jnp.pad(x_nhwc, ((0, 0), (0, H_out * kh - H), (0, W_out * kw - W), (0, 0)))
    sums = x_pad.reshape(B, H_out, kh, W_out, kw, C).sum(axis=(2, 4))
    # ceil_mode with padding=0: divisor counts only in-bounds elements.
    cnt_h = jnp.minimum(jnp.arange(H_out) * kh + kh, H) - jnp.arange(H_out) * kh
    cnt_w = jnp.minimum(jnp.arange(W_out) * kw + kw, W) - jnp.arange(W_out) * kw
    divisor = (cnt_h[:, None] * cnt_w[None, :]).astype(x_nhwc.dtype)
    return sums / divisor[None, :, :, None]


def _fold_bn(gamma, beta, mean, var, eps=1e-5):
    scale = gamma / jnp.sqrt(var + eps)
    bias = beta - mean * scale
    return scale, bias


def _conv_bn_act(x_nhwc, w_oihw, bn, *, stride, padding, apply_relu,
                 residual=None, tile_m=None):
    O, I, kh, kw = w_oihw.shape
    patches, (B, H_out, W_out) = _im2col(x_nhwc, kh, kw, stride, padding)
    # torch (O, I, kh, kw) -> (kh*kw*I, O), matching the patch feature order.
    w2d = jnp.transpose(w_oihw, (2, 3, 1, 0)).reshape(kh * kw * I, O).astype(x_nhwc.dtype)
    scale, bias = _fold_bn(*bn)
    res2d = None
    if residual is not None:
        res2d = residual.reshape(B * H_out * W_out, O)
    out2d = _matmul_bn_act(patches, w2d, scale, bias, apply_relu=apply_relu,
                           residual=res2d, out_dtype=x_nhwc.dtype, tile_m=tile_m)
    return out2d.reshape(B, H_out, W_out, O)


# ----------------------------------------------------------------------------
# BasicBlock forward (inference)
# ----------------------------------------------------------------------------
def basic_block_forward(x_nchw, params, *, stride, if_first, tile_m=None):
    """x_nchw: (B, C_in, H, W)  -> (B, C_out, H_out, W_out), PyTorch layout."""
    sh, sw = stride
    x = jnp.transpose(x_nchw, (0, 2, 3, 1))   # NHWC (channels lane-dense)
    C_in = x.shape[-1]
    C_out = params["conv0_w"].shape[0]

    # shortcut branch (mirrors ShortCut.__init__ logic; stride[0] check)
    if C_in != C_out or sh != 1:
        if if_first:
            sc = _conv_bn_act(x, params["sc_w"], params["sc_bn"],
                              stride=(sh, sw), padding=(0, 0),
                              apply_relu=False, tile_m=tile_m)
        else:
            xp = _avg_pool_ceil(x, (sh, sw))
            sc = _conv_bn_act(xp, params["sc_w"], params["sc_bn"],
                              stride=(1, 1), padding=(0, 0),
                              apply_relu=False, tile_m=tile_m)
    elif if_first:
        sc = _conv_bn_act(x, params["sc_w"], params["sc_bn"],
                          stride=(sh, sw), padding=(0, 0),
                          apply_relu=False, tile_m=tile_m)
    else:
        sc = x

    # main branch: conv0(+BN+ReLU), then conv1(+BN) with the residual add and
    # the final ReLU fused into the same Pallas kernel.
    y = _conv_bn_act(x, params["conv0_w"], params["conv0_bn"],
                     stride=(sh, sw), padding=(1, 1),
                     apply_relu=True, tile_m=tile_m)
    y = _conv_bn_act(y, params["conv1_w"], params["conv1_bn"],
                     stride=(1, 1), padding=(1, 1),
                     apply_relu=True, residual=sc, tile_m=tile_m)

    return jnp.transpose(y, (0, 3, 1, 2))     # back to NCHW


# ----------------------------------------------------------------------------
# Pure-JAX reference (for correctness check)
# ----------------------------------------------------------------------------
def _ref_conv_bn(x_nchw, w, bn, stride, padding, relu):
    y = jax.lax.conv_general_dilated(
        x_nchw, w, window_strides=stride,
        padding=[(padding[0], padding[0]), (padding[1], padding[1])],
        dimension_numbers=("NCHW", "OIHW", "NCHW"),
        precision=jax.lax.Precision.HIGHEST)
    scale, bias = _fold_bn(*bn)
    y = y * scale[None, :, None, None] + bias[None, :, None, None]
    return jnp.maximum(y, 0.0) if relu else y


def basic_block_reference(x_nchw, params, *, stride, if_first):
    sh, sw = stride
    C_in = x_nchw.shape[1]
    C_out = params["conv0_w"].shape[0]
    if C_in != C_out or sh != 1:
        if if_first:
            sc = _ref_conv_bn(x_nchw, params["sc_w"], params["sc_bn"],
                              (sh, sw), (0, 0), False)
        else:
            xp = _avg_pool_ceil(jnp.transpose(x_nchw, (0, 2, 3, 1)), (sh, sw))
            xp = jnp.transpose(xp, (0, 3, 1, 2))
            sc = _ref_conv_bn(xp, params["sc_w"], params["sc_bn"],
                              (1, 1), (0, 0), False)
    elif if_first:
        sc = _ref_conv_bn(x_nchw, params["sc_w"], params["sc_bn"],
                          (sh, sw), (0, 0), False)
    else:
        sc = x_nchw
    y = _ref_conv_bn(x_nchw, params["conv0_w"], params["conv0_bn"],
                     (sh, sw), (1, 1), True)
    y = _ref_conv_bn(y, params["conv1_w"], params["conv1_bn"],
                     (1, 1), (1, 1), False)
    return jnp.maximum(y + sc, 0.0)


if __name__ == "__main__":
    # BasicBlock(in_channels=16, out_channels=32, stride=(2,2), if_first=False)
    B, C_in, H, W = 2, 16, 16, 16
    C_out = 32
    stride = (2, 2)
    if_first = False

    key = jax.random.PRNGKey(0)
    ks = jax.random.split(key, 8)

    def bn_params(k, c):
        k1, k2, k3, k4 = jax.random.split(k, 4)
        gamma = 1.0 + 0.1 * jax.random.normal(k1, (c,), jnp.float32)
        beta = 0.1 * jax.random.normal(k2, (c,), jnp.float32)
        mean = 0.1 * jax.random.normal(k3, (c,), jnp.float32)
        var = jnp.abs(jax.random.normal(k4, (c,), jnp.float32)) + 0.5
        return (gamma, beta, mean, var)

    x = jax.random.normal(ks[0], (B, C_in, H, W), jnp.float32)
    params = {
        "conv0_w": 0.1 * jax.random.normal(ks[1], (C_out, C_in, 3, 3), jnp.float32),
        "conv0_bn": bn_params(ks[2], C_out),
        "conv1_w": 0.1 * jax.random.normal(ks[3], (C_out, C_out, 3, 3), jnp.float32),
        "conv1_bn": bn_params(ks[4], C_out),
        "sc_w": 0.1 * jax.random.normal(ks[5], (C_out, C_in, 1, 1), jnp.float32),
        "sc_bn": bn_params(ks[6], C_out),
    }

    out = basic_block_forward(x, params, stride=stride, if_first=if_first)
    out = jax.block_until_ready(out)

    ref = basic_block_reference(x, params, stride=stride, if_first=if_first)
    assert out.shape == (B, C_out, H // 2, W // 2), out.shape
    assert jnp.allclose(out, ref, atol=1e-3, rtol=1e-3), float(jnp.max(jnp.abs(out - ref)))

    print("KERNEL_OK")
</pallas_src>

<mosaic_0001>
module attributes {stable_mosaic.version = 11 : i64} {
  func.func @_conv_mm_kernel(%arg0: i32, %arg1: memref<16x128xf32, #tpu.memory_space<vmem>>, %arg2: memref<128x128xf32, #tpu.memory_space<vmem>>, %arg3: memref<1x128xf32, #tpu.memory_space<vmem>>, %arg4: memref<1x128xf32, #tpu.memory_space<vmem>>, %arg5: memref<16x128xf32, #tpu.memory_space<vmem>>) attributes {dimension_semantics = [#tpu.dimension_semantics<parallel>], iteration_bounds = array<i64: 8>, scalar_prefetch = 0 : i64, scratch_operands = 0 : i64, tpu.core_type = #tpu.core_type<tc>, window_params = [{transform_indices = @transform_0, window_bounds = array<i64: 16, 128>}, {pipeline_mode = #tpu.pipeline_mode<synchronous>, transform_indices = @transform_1, window_bounds = array<i64: 128, 128>}, {pipeline_mode = #tpu.pipeline_mode<synchronous>, transform_indices = @transform_2, window_bounds = array<i64: 1, 128>}, {pipeline_mode = #tpu.pipeline_mode<synchronous>, transform_indices = @transform_3, window_bounds = array<i64: 1, 128>}, {transform_indices = @transform_4, window_bounds = array<i64: 16, 128>}]} {
    %c0 = arith.constant 0 : index
    %c0_0 = arith.constant 0 : index
    %0 = vector.load %arg1[%c0, %c0_0] : memref<16x128xf32, #tpu.memory_space<vmem>>, vector<16x128xf32>
    %c0_1 = arith.constant 0 : index
    %c0_2 = arith.constant 0 : index
    %1 = vector.load %arg2[%c0_1, %c0_2] : memref<128x128xf32, #tpu.memory_space<vmem>>, vector<128x128xf32>
    %cst = arith.constant dense<0.000000e+00> : vector<16x128xf32>
    %2 = tpu.matmul %0, %1, %cst {dimension_numbers = #tpu.dot_dimension_numbers<[1], [0], [0], [1], [0, 0, 1, 1], [], []>} : vector<16x128xf32>, vector<128x128xf32>, vector<16x128xf32> -> vector<16x128xf32>
    %c0_3 = arith.constant 0 : index
    %c0_4 = arith.constant 0 : index
    %3 = vector.load %arg3[%c0_3, %c0_4] : memref<1x128xf32, #tpu.memory_space<vmem>>, vector<1x128xf32>
    %4 = vector.broadcast %3 : vector<1x128xf32> to vector<16x128xf32>
    %5 = arith.mulf %2, %4 : vector<16x128xf32>
    %c0_5 = arith.constant 0 : index
    %c0_6 = arith.constant 0 : index
    %6 = vector.load %arg4[%c0_5, %c0_6] : memref<1x128xf32, #tpu.memory_space<vmem>>, vector<1x128xf32>
    %7 = vector.broadcast %6 : vector<1x128xf32> to vector<16x128xf32>
    %8 = arith.addf %5, %7 : vector<16x128xf32>
    %c0_7 = arith.constant 0 : index
    %c0_8 = arith.constant 0 : index
    %9 = vector.load %arg5[%c0_7, %c0_8] : memref<16x128xf32, #tpu.memory_space<vmem>>, vector<16x128xf32>
    tpu.vector_store %arg5[%c0_7, %c0_8], %8 {strides = array<i32>} : memref<16x128xf32, #tpu.memory_space<vmem>>, vector<16x128xf32>,
    return
  }
  func.func @transform_0(%arg0: i32) -> (i32, i32) {
    %c0_i32 = arith.constant 0 : i32
    %c0_i32_0 = arith.constant 0 : i32
    return %arg0, %c0_i32 : i32, i32
  }
  func.func @transform_1(%arg0: i32) -> (i32, i32) {
    %c0_i32 = arith.constant 0 : i32
    %c0_i32_0 = arith.constant 0 : i32
    %c0_i32_1 = arith.constant 0 : i32
    return %c0_i32, %c0_i32_0 : i32, i32
  }
  func.func @transform_2(%arg0: i32) -> (i32, i32) {
    %c0_i32 = arith.constant 0 : i32
    %c0_i32_0 = arith.constant 0 : i32
    %c0_i32_1 = arith.constant 0 : i32
    return %c0_i32, %c0_i32_0 : i32, i32
  }
  func.func @transform_3(%arg0: i32) -> (i32, i32) {
    %c0_i32 = arith.constant 0 : i32
    %c0_i32_0 = arith.constant 0 : i32
    %c0_i32_1 = arith.constant 0 : i32
    return %c0_i32, %c0_i32_0 : i32, i32
  }
  func.func @transform_4(%arg0: i32) -> (i32, i32) {
    %c0_i32 = arith.constant 0 : i32
    %c0_i32_0 = arith.constant 0 : i32
    return %arg0, %c0_i32 : i32, i32
  }
}

</mosaic_0001>

<llo_original>
// kernel: tpu_custom_call.1
$region0: #{tpu_custom_call.1}
  #allocation0 [shape = 'u32[]', space=smem, size = 0x4, offset = 0x4, fixed_abs, tag = 'smem constant byte address 0x4 - core index']
  #allocation1 [shape = 'u32[72,128]{1,0:T(1,128)}', space=vmem, size = 0x9000, scoped, tag = 'internal scratch']
  %s0 = inlined_call_operand.hbm [shape: f32[128,128], index: 0, kind: input, shape index: {}]
  %s1 = inlined_call_operand.hbm [shape: f32[128,128], index: 1, kind: input, shape index: {}]
  %s2 = inlined_call_operand.vmem [shape: f32[1,128], index: 2, kind: input, shape index: {}]
  %s3 = inlined_call_operand.vmem [shape: f32[1,128], index: 3, kind: input, shape index: {}]
  %s4 = inlined_call_operand.hbm [shape: f32[128,128], index: 4, kind: output, shape index: {}]
  %s5 = sld [smem:[#allocation0]]
  $region57: #{tpu_custom_call.1} parent=0
    _
  %s7 = ssub.s32 1, %s5
  %s8 = scalar_select 0, %s7, %s5
  $region1: #{tpu_custom_call.1} parent=0
    #allocation2 [shape = 'u8[16384]{0}', space=vmem, size = 0x4000, scoped, tag = 'input window, operand 0']
    #allocation3 [shape = 's32[2]{0}', space=sflag, size = 0x8, scoped, tag = 'scoped memory for tpu_custom_call.1']
    #allocation4 [shape = 's32[2]{0}', space=sflag, size = 0x8, scoped, tag = 'scoped memory for tpu_custom_call.1']
    #allocation5 [shape = 'u8[65536]{0}', space=vmem, size = 0x10000, scoped, tag = 'input window, operand 1, single buffered']
    #allocation6 [shape = 's32[1]{0}', space=sflag, size = 0x4, scoped, tag = 'scoped memory for tpu_custom_call.1']
    #allocation7 [shape = 'u8[16384]{0}', space=vmem, size = 0x4000, scoped, tag = 'output window, operand 0']
    %9 = vsyncpa [#allocation3], 0
    %s10 = scalar_lea.sflag [#allocation3], 1
    %11 = vsyncpa %s10, 0
    %12 = vsyncpa [#allocation6], 0
    %13 = vsyncpa [#allocation4], 0
    %s14 = scalar_lea.sflag [#allocation4], 1
    %15 = vsyncpa %s14, 0
    loop: start=0, step=1, limit=10
    $region2: #{tpu_custom_call.1} parent=1 // loop_pre_header
      _
    $region3: #{tpu_custom_call.1} parent=1 // loop_header
      %s17 = sphi 0, %s21
      %p18 = scmp.ge.s32.totalorder %s17, 10
      %s27 = sphi 0, %s29
      %s30 = sphi 0, %s27
      %s31 = sphi 0, %s30
      %s47 = sphi 0, %s31
      %s51 = sphi 0, %s51
      %s53 = sphi 0, %s51
      %s54 = sphi 0, %s53
      %s68 = sphi 0, %s54
      %s72 = sphi 0, %s72
      %s74 = sphi 0, %s72
      %s75 = sphi 0, %s74
      %s89 = sphi 0, %s75
      %s93 = sphi 0, %s93
      %s95 = sphi 0, %s93
      %s96 = sphi 0, %s95
      %s110 = sphi 0, %s96
      %s116 = sphi 0, %s118
      %s119 = sphi 0, %s116
      %s120 = sphi 0, %s119
      %s136 = sphi 0, %s120
    $region4: #{tpu_custom_call.1} parent=1 // loop_header_branch
      %20 = sbr.rel (%p18) target = $region8
    $region5: #{tpu_custom_call.1} parent=1 // loop_body
      %s22 = ssub.s32 %s17, 1
      %s23 = ssub.s32 %s17, 2
      %s24 = sadd.s32 %s17, 1
      %s25 = ssub.s32 %s17, %s24
      %p26 = scmp.eq.s32.totalorder %s25, 0
      %s28 = sadd.s32 %s27, 1
      %s29 = scalar_select %p26, %s27, %s28
      %p32 = pneg %p26
      %p33 = scmp.eq.s32.totalorder %s17, 7
      %p34 = por %p32, %p33
      %p35 = scmp.ne.s32.totalorder %s27, %s30
      %p36 = scmp.eq.s32.totalorder %s17, 0
      %p37 = por %p35, %p36
      %p38 = scmp.ne.s32.totalorder %s27, %s30
      %p39 = scmp.eq.s32.totalorder %s22, 7
      %p40 = por %p38, %p39
      %p41 = scmp.ne.s32.totalorder %s30, %s31
      %p42 = scmp.eq.s32.totalorder %s22, 0
      %p43 = por %p41, %p42
      %p44 = scmp.ne.s32.totalorder %s30, %s31
      %p45 = scmp.eq.s32.totalorder %s23, 7
      %p46 = por %p44, %p45
      %p48 = scmp.ne.s32.totalorder %s31, %s47
      %p49 = scmp.eq.s32.totalorder %s23, 0
      %p50 = por %p48, %p49
      %s52 = sadd.s32 %s51, 1
      %p55 = scmp.eq.s32.totalorder %s17, 7
      %p56 = scmp.ne.s32.totalorder %s51, %s53
      %p57 = scmp.eq.s32.totalorder %s17, 0
      %p58 = por %p56, %p57
      %p59 = scmp.ne.s32.totalorder %s51, %s53
      %p60 = scmp.eq.s32.totalorder %s22, 7
      %p61 = por %p59, %p60
      %p62 = scmp.ne.s32.totalorder %s53, %s54
      %p63 = scmp.eq.s32.totalorder %s22, 0
      %p64 = por %p62, %p63
      %p65 = scmp.ne.s32.totalorder %s53, %s54
      %p66 = scmp.eq.s32.totalorder %s23, 7
      %p67 = por %p65, %p66
      %p69 = scmp.ne.s32.totalorder %s54, %s68
      %p70 = scmp.eq.s32.totalorder %s23, 0
      %p71 = por %p69, %p70
      %s73 = sadd.s32 %s72, 1
      %p76 = scmp.eq.s32.totalorder %s17, 7
      %p77 = scmp.ne.s32.totalorder %s72, %s74
      %p78 = scmp.eq.s32.totalorder %s17, 0
      %p79 = por %p77, %p78
      %p80 = scmp.ne.s32.totalorder %s72, %s74
      %p81 = scmp.eq.s32.totalorder %s22, 7
      %p82 = por %p80, %p81
      %p83 = scmp.ne.s32.totalorder %s74, %s75
      %p84 = scmp.eq.s32.totalorder %s22, 0
      %p85 = por %p83, %p84
      %p86 = scmp.ne.s32.totalorder %s74, %s75
      %p87 = scmp.eq.s32.totalorder %s23, 7
      %p88 = por %p86, %p87
      %p90 = scmp.ne.s32.totalorder %s75, %s89
      %p91 = scmp.eq.s32.totalorder %s23, 0
      %p92 = por %p90, %p91
      %s94 = sadd.s32 %s93, 1
      %p97 = scmp.eq.s32.totalorder %s17, 7
      %p98 = scmp.ne.s32.totalorder %s93, %s95
      %p99 = scmp.eq.s32.totalorder %s17, 0
      %p100 = por %p98, %p99
      %p101 = scmp.ne.s32.totalorder %s93, %s95
      %p102 = scmp.eq.s32.totalorder %s22, 7
      %p103 = por %p101, %p102
      %p104 = scmp.ne.s32.totalorder %s95, %s96
      %p105 = scmp.eq.s32.totalorder %s22, 0
      %p106 = por %p104, %p105
      %p107 = scmp.ne.s32.totalorder %s95, %s96
      %p108 = scmp.eq.s32.totalorder %s23, 7
      %p109 = por %p107, %p108
      %p111 = scmp.ne.s32.totalorder %s96, %s110
      %p112 = scmp.eq.s32.totalorder %s23, 0
      %p113 = por %p111, %p112
      %s114 = ssub.s32 %s17, %s24
      %p115 = scmp.eq.s32.totalorder %s114, 0
      %s117 = sadd.s32 %s116, 1
      %s118 = scalar_select %p115, %s116, %s117
      %p121 = pneg %p115
      %p122 = scmp.eq.s32.totalorder %s17, 7
      %p123 = por %p121, %p122
      %p124 = scmp.ne.s32.totalorder %s116, %s119
      %p125 = scmp.eq.s32.totalorder %s17, 0
      %p126 = por %p124, %p125
      %p127 = scmp.ne.s32.totalorder %s116, %s119
      %p128 = scmp.eq.s32.totalorder %s22, 7
      %p129 = por %p127, %p128
      %p130 = scmp.ne.s32.totalorder %s119, %s120
      %p131 = scmp.eq.s32.totalorder %s22, 0
      %p132 = por %p130, %p131
      %p133 = scmp.ne.s32.totalorder %s119, %s120
      %p134 = scmp.eq.s32.totalorder %s23, 7
      %p135 = por %p133, %p134
      %p137 = scmp.ne.s32.totalorder %s120, %s136
      %p138 = scmp.eq.s32.totalorder %s23, 0
      %p139 = por %p137, %p138
      %p140 = scmp.le.s32.totalorder 1, %s17
      %p141 = scmp.lt.s32.totalorder %s17, 9
      %p142 = pnand %p140, %p141
      %p143 = pneg %p142
      // Predicated region
      $region9: #{tpu_custom_call.1} parent=5 // pred_check
        _
      $region10: #{tpu_custom_call.1} parent=5 // pred_check_branch
        %145 = sbr.rel (%p142) target = $region12
      $region11: #{tpu_custom_call.1} parent=5 // pred_region
        %s146 = ssub.s32 %s17, 1
        // Predicated region
        $region13: #{tpu_custom_call.1} parent=11 // pred_check
          %p147 = pneg %p64
        $region14: #{tpu_custom_call.1} parent=11 // pred_check_branch
          %149 = sbr.rel (%p147) target = $region16
        $region15: #{tpu_custom_call.1} parent=11 // pred_region
          %151 = vsyncadd [#allocation6], 0
          %s152 = sshll.u32 %s1, 4
          %s153 = int_to_ptr.hbm [resolvable:$true] %s152
          %s154 = sshll.u32 [#allocation5], 4
          %s155 = int_to_ptr.vmem [resolvable:$true] %s154
          %160 = dma.hbm_to_vmem [thread:$0]  %s153, 2048, %s155, [#allocation6], 128, 128, 8
        $region16: #{tpu_custom_call.1} parent=11 // pred_fallthru
          _
        // Predicated region
        $region17: #{tpu_custom_call.1} parent=11 // pred_check
          %p161 = pneg %p85
        $region18: #{tpu_custom_call.1} parent=11 // pred_check_branch
          %163 = sbr.rel (%p161) target = $region20
        $region19: #{tpu_custom_call.1} parent=11 // pred_region
          _
        $region20: #{tpu_custom_call.1} parent=11 // pred_fallthru
          _
        // Predicated region
        $region21: #{tpu_custom_call.1} parent=11 // pred_check
          %p164 = pneg %p106
        $region22: #{tpu_custom_call.1} parent=11 // pred_check_branch
          %166 = sbr.rel (%p164) target = $region24
        $region23: #{tpu_custom_call.1} parent=11 // pred_region
          _
        $region24: #{tpu_custom_call.1} parent=11 // pred_fallthru
          _
      $region12: #{tpu_custom_call.1} parent=5 // pred_fallthru
        _
      %p167 = scmp.lt.s32.totalorder %s17, 8
      // Predicated region
      $region25: #{tpu_custom_call.1} parent=5 // pred_check
        %p168 = pneg %p167
      $region26: #{tpu_custom_call.1} parent=5 // pred_check_branch
        %170 = sbr.rel (%p168) target = $region28
      $region27: #{tpu_custom_call.1} parent=5 // pred_region
        // Predicated region
        $region29: #{tpu_custom_call.1} parent=27 // pred_check
          %p171 = pneg %p37
        $region30: #{tpu_custom_call.1} parent=27 // pred_check_branch
          %173 = sbr.rel (%p171) target = $region32
        $region31: #{tpu_custom_call.1} parent=27 // pred_region
          %s174 = sand.u32 %s27, 1
          %s175 = scalar_lea.sflag [#allocation3], %s174
          %s176 = sand.u32 %s27, 1
          %s177 = smul.addr %s176, 16
          %s178 = scalar_lea.vmem [#allocation2], %s177
          %s179 = smul.u32 2, %s17
          %181 = vsyncadd %s175, 0
          %s182 = smul.addr %s179, 8
          %s183 = scalar_lea.hbm %s0, %s182
          %s184 = sshll.u32 %s183, 4
          %s185 = int_to_ptr.hbm [resolvable:$true] %s184
          %s186 = sshll.u32 %s178, 4
          %s187 = int_to_ptr.vmem [resolvable:$true] %s186
          %192 = dma.hbm_to_vmem [thread:$0]  %s185, 256, %s187, %s175, 128, 128, 8
        $region32: #{tpu_custom_call.1} parent=27 // pred_fallthru
          _
      $region28: #{tpu_custom_call.1} parent=5 // pred_fallthru
        _
      %p193 = scmp.le.s32.totalorder 1, %s17
      %p194 = scmp.lt.s32.totalorder %s17, 9
      %p195 = pnand %p193, %p194
      %p196 = pneg %p195
      // Predicated region
      $region33: #{tpu_custom_call.1} parent=5 // pred_check
        _
      $region34: #{tpu_custom_call.1} parent=5 // pred_check_branch
        %198 = sbr.rel (%p195) target = $region36
      $region35: #{tpu_custom_call.1} parent=5 // pred_region
        %s199 = ssub.s32 %s17, 1
        %s200 = sand.u32 %s30, 1
        %s201 = scalar_lea.sflag [#allocation3], %s200
        %s202 = sand.u32 %s30, 1
        %s203 = smul.addr %s202, 16
        %s204 = scalar_lea.vmem [#allocation2], %s203
        // Predicated region
        $region37: #{tpu_custom_call.1} parent=35 // pred_check
          %p205 = pneg %p43
        $region38: #{tpu_custom_call.1} parent=35 // pred_check_branch
          %207 = sbr.rel (%p205) target = $region40
        $region39: #{tpu_custom_call.1} parent=35 // pred_region
          %209 = dma.done %s201, 256
        $region40: #{tpu_custom_call.1} parent=35 // pred_fallthru
          _
        // Predicated region
        $region41: #{tpu_custom_call.1} parent=35 // pred_check
          %p210 = pneg %p64
        $region42: #{tpu_custom_call.1} parent=35 // pred_check_branch
          %212 = sbr.rel (%p210) target = $region44
        $region43: #{tpu_custom_call.1} parent=35 // pred_region
          %214 = dma.done [#allocation6], 2048
        $region44: #{tpu_custom_call.1} parent=35 // pred_fallthru
          _
        %s215 = sand.u32 %s30, 1
        %s216 = scalar_lea.sflag [#allocation3], %s215
        %s217 = sand.u32 %s30, 1
        %s218 = smul.addr %s217, 16
        %s219 = scalar_lea.vmem [#allocation2], %s218
        %p220 = pneg %p43
        %p221 = pneg %p40
        %p222 = pneg %p64
        %p223 = pneg %p61
        %p224 = pneg %p85
        %p225 = pneg %p82
        %p226 = pneg %p106
        %p227 = pneg %p103
        %p228 = pneg %p132
        %p229 = pneg %p129
        %s230 = sand.u32 %s119, 1
        %s231 = scalar_lea.sflag [#allocation4], %s230
        %s232 = sand.u32 %s119, 1
        %s233 = smul.addr %s232, 16
        %s234 = scalar_lea.vmem [#allocation7], %s233
        %s235 = smul.u32 2, %s22
        %s236 = smul.u32 2, %s22
        %v237 = vld [vmem:[%s204] sm:$0xff]
        %v238 = vld [vmem:[%s204 + $0x8] sm:$0xff]
        %v239 = vld [vmem:[#allocation5] sm:$0xff]
        %v240 = vld [vmem:[#allocation5 + $0x8] sm:$0xff]
        %v241 = vld [vmem:[#allocation5 + $0x10] sm:$0xff]
        %v242 = vld [vmem:[#allocation5 + $0x18] sm:$0xff]
        %v243 = vld [vmem:[#allocation5 + $0x20] sm:$0xff]
        %v244 = vld [vmem:[#allocation5 + $0x28] sm:$0xff]
        %v245 = vld [vmem:[#allocation5 + $0x30] sm:$0xff]
        %v246 = vld [vmem:[#allocation5 + $0x38] sm:$0xff]
        %v247 = vld [vmem:[#allocation5 + $0x40] sm:$0xff]
        %v248 = vld [vmem:[#allocation5 + $0x48] sm:$0xff]
        %v249 = vld [vmem:[#allocation5 + $0x50] sm:$0xff]
        %v250 = vld [vmem:[#allocation5 + $0x58] sm:$0xff]
        %v251 = vld [vmem:[#allocation5 + $0x60] sm:$0xff]
        %v252 = vld [vmem:[#allocation5 + $0x68] sm:$0xff]
        %v253 = vld [vmem:[#allocation5 + $0x70] sm:$0xff]
        %v254 = vld [vmem:[#allocation5 + $0x78] sm:$0xff]
        %255 = vmatpush.msra.mxu0 %v254
        %256 = vmatpush.msra.mxu0 %v253
        %257 = vmatpush.msra.mxu0 %v252
        %258 = vmatpush.msra.mxu0 %v251
        %259 = vmatpush.msra.mxu0 %v250
        %260 = vmatpush.msra.mxu0 %v249
        %261 = vmatpush.msra.mxu0 %v248
        %262 = vmatpush.msra.mxu0 %v247
        %263 = vmatpush.msra.mxu0 %v246
        %264 = vmatpush.msra.mxu0 %v245
        %265 = vmatpush.msra.mxu0 %v244
        %266 = vmatpush.msra.mxu0 %v243
        %267 = vmatpush.msra.mxu0 %v242
        %268 = vmatpush.msra.mxu0 %v241
        %269 = vmatpush.msra.mxu0 %v240
        %270 = vmatpush.msra.mxu0 %v239
        %271 = vmatmul.f32.gmra.mxu0 %v237
        %v272 = vpop.f32.mrf.mxu0
        %v273 = vadd.f32 0.0, %v272
        %274 = vmatmul.f32.gmra.mxu0 %v238
        %v275 = vpop.f32.mrf.mxu0
        %v276 = vadd.f32 0.0, %v275
        %277 = vdwg.mxu0
        %v278 = vld [vmem:[%s2] sm:$0x1]
        %v280 = vperm.slane %v278, 0
        %v282 = vmul.f32 %v273, %v280
        %v283 = vmul.f32 %v276, %v280
        %v284 = vld [vmem:[%s3] sm:$0x1]
        %v286 = vperm.slane %v284, 0
        %v288 = vadd.f32 %v282, %v286
        %v289 = vadd.f32 %v283, %v286
        %290 = vst [vmem:[%s234] sm:$0xff] %v288
        %291 = vst [vmem:[%s234 + $0x8] sm:$0xff] %v289
        %s292 = sand.u32 %s119, 1
        %s293 = scalar_lea.sflag [#allocation4], %s292
        %s294 = sand.u32 %s119, 1
        %s295 = smul.addr %s294, 16
        %s296 = scalar_lea.vmem [#allocation7], %s295
        // Predicated region
        $region45: #{tpu_custom_call.1} parent=35 // pred_check
          %p297 = pneg %p129
        $region46: #{tpu_custom_call.1} parent=35 // pred_check_branch
          %299 = sbr.rel (%p297) target = $region48
        $region47: #{tpu_custom_call.1} parent=35 // pred_region
          %s300 = smul.u32 2, %s22
          %302 = vsyncadd %s293, 0
          %s303 = smul.addr %s300, 8
          %s304 = scalar_lea.hbm %s4, %s303
          %s305 = sshll.u32 %s296, 4
          %s306 = int_to_ptr.vmem [resolvable:$true] %s305
          %s307 = sshll.u32 %s304, 4
          %s308 = int_to_ptr.hbm [resolvable:$true] %s307
          %313 = dma.vmem_to_hbm [thread:$0]  %s306, 256, %s308, %s293, 128, 128, 8
        $region48: #{tpu_custom_call.1} parent=35 // pred_fallthru
          _
      $region36: #{tpu_custom_call.1} parent=5 // pred_fallthru
        _
      %p314 = scmp.le.s32.totalorder 2, %s17
      // Predicated region
      $region49: #{tpu_custom_call.1} parent=5 // pred_check
        %p315 = pneg %p314
      $region50: #{tpu_custom_call.1} parent=5 // pred_check_branch
        %317 = sbr.rel (%p315) target = $region52
      $region51: #{tpu_custom_call.1} parent=5 // pred_region
        %s318 = ssub.s32 %s17, 2
        // Predicated region
        $region53: #{tpu_custom_call.1} parent=51 // pred_check
          %p319 = pneg %p135
        $region54: #{tpu_custom_call.1} parent=51 // pred_check_branch
          %321 = sbr.rel (%p319) target = $region56
        $region55: #{tpu_custom_call.1} parent=51 // pred_region
          %s322 = sand.u32 %s120, 1
          %s323 = scalar_lea.sflag [#allocation4], %s322
          %s324 = sand.u32 %s120, 1
          %s325 = smul.addr %s324, 16
          %s326 = scalar_lea.vmem [#allocation7], %s325
          %328 = dma.done %s323, 256
        $region56: #{tpu_custom_call.1} parent=51 // pred_fallthru
          _
      $region52: #{tpu_custom_call.1} parent=5 // pred_fallthru
        _
    $region6: #{tpu_custom_call.1} parent=1 // loop_footer
      %s21 = sadd.s32 1, %s17
    $region7: #{tpu_custom_call.1} parent=1 // loop_footer_branch
      %16 = sbr.rel target = $region3
    $region8: #{tpu_custom_call.1} parent=1 // loop_exit
      _
    %329 = vsyncpa [#allocation3], 1
    %s330 = scalar_lea.sflag [#allocation3], 1
    %331 = vsyncpa %s330, 1
    %332 = vsyncpa [#allocation6], 1
    %333 = vsyncpa [#allocation4], 1
    %s334 = scalar_lea.sflag [#allocation4], 1
    %335 = vsyncpa %s334, 1

</llo_original>
